<compile_context>
chip_gen: v6e
topology: v6e:2x2x1
jax: 0.10.0
libtpu: 0.0.40
codegen_flags: <defaults>
</compile_context>

<pallas_src>
import functools

import jax
import jax.numpy as jnp
from jax.experimental import pallas as pl
from jax.experimental.pallas import tpu as pltpu


_VMEM_BUDGET = 12 << 20     # conservative working-set budget (fits all generations' scoped defaults)
_VMEM_LIMIT = 32 << 20      # explicit scoped-VMEM limit handed to Mosaic (safe on v5e/v6e/v7x)


# ----------------------------------------------------------------------------
# Tiling helpers
# ----------------------------------------------------------------------------
def _round8(n):
    return max(8, (n // 8) * 8)


def _pick_k_tile(d_in, override=None):
    """Reduction-axis tile for the projections (full d_in when small)."""
    if override is not None:
        return min(override, d_in)
    if d_in <= 1024:
        return d_in
    for t in (512, 256, 128):
        if d_in % t == 0:
            return t
    # TODO(synk): pad / Element-index the reduction axis for large d_in that is
    # not a multiple of 128.
    return d_in


def _pick_row_tile(rows, k_tile, out_width, acc_width, itemsize, target=512):
    """Largest multiple-of-8 row tile whose double-buffered working set
    (x tile + weight slab + output tiles + f32 accumulator) fits the VMEM budget."""
    def usage(t):
        return (2 * t * k_tile * itemsize            # x tile (double buffered)
                + 2 * k_tile * out_width * itemsize  # weight slab (double buffered)
                + 2 * t * out_width * itemsize       # output tiles (double buffered)
                + t * acc_width * 4)                 # f32 accumulator scratch

    tm = rows if rows <= target else _round8(target)
    while tm > 8 and usage(tm) > _VMEM_BUDGET:
        tm = _round8(tm // 2)
    # TODO(synk): also tile out_dim (second 'parallel' axis) when the weight slab
    # alone exceeds the budget at very large D.
    return min(tm, rows)


def _attn_seq_tile(seq, cap):
    """Largest divisor of seq that is <= cap, preferring multiples of 8."""
    cap = max(1, min(seq, cap))
    fallback = 1
    for t in range(cap, 0, -1):
        if seq % t == 0:
            if t % 8 == 0 or t == seq:
                return t
            if fallback == 1:
                fallback = t
    # TODO(synk): pad the sequence (or use Element-indexed maps) when seq has no
    # multiple-of-8 divisor <= cap.
    return fallback


def _attn_tiles(seq, d_model, num_heads, head_dim, itemsize):
    tq_cap, tk_cap = 256, 512
    while True:
        tq = _attn_seq_tile(seq, tq_cap)
        tk = _attn_seq_tile(seq, tk_cap)
        usage = (2 * tq * d_model * itemsize                  # q (resident, dbl-buffered)
                 + 4 * tk * d_model * itemsize                # k + v (dbl-buffered)
                 + 2 * tq * d_model * itemsize                # o (dbl-buffered)
                 + num_heads * tq * (head_dim + 2) * 4)       # f32 acc + m + l scratch
        if usage <= _VMEM_BUDGET or (tq_cap <= 64 and tk_cap <= 64):
            return tq, tk
        tq_cap = max(64, tq_cap // 2)
        tk_cap = max(64, tk_cap // 2)


# ----------------------------------------------------------------------------
# Fused QKV projection (+bias, + optional RMSNorm(q)/RMSNorm(k) epilogue)
#   x2d (rows, D) @ w_qkv (D, 3D) + b_qkv  ->  q, k, v each (rows, D)
# ----------------------------------------------------------------------------
def _qkv_kernel(x_ref, w_ref, b_ref, g_ref, q_ref, k_ref, v_ref, acc_ref,
                *, d_model, qk_norm, eps):
    k_step = pl.program_id(1)

    @pl.when(k_step == 0)
    def _():
        acc_ref[...] = jnp.zeros_like(acc_ref)

    # MXU matmul in the wire dtype; accumulate in f32.
    acc_ref[...] += jnp.dot(x_ref[...], w_ref[...],
                            preferred_element_type=jnp.float32)

    @pl.when(k_step == pl.num_programs(1) - 1)
    def _():
        y = acc_ref[...] + b_ref[...].astype(jnp.float32)       # (tm, 3D), f32
        d = d_model
        q = y[:, 0:d]
        k = y[:, d:2 * d]
        v = y[:, 2 * d:3 * d]
        if qk_norm:                                             # static branch
            g = g_ref[...].astype(jnp.float32)                  # (2, D)
            gq = g[0:1, :]
            gk = g[1:2, :]
            q = q * jax.lax.rsqrt(jnp.mean(q * q, axis=-1, keepdims=True) + eps) * gq
            k = k * jax.lax.rsqrt(jnp.mean(k * k, axis=-1, keepdims=True) + eps) * gk
        q_ref[...] = q.astype(q_ref.dtype)
        k_ref[...] = k.astype(k_ref.dtype)
        v_ref[...] = v.astype(v_ref.dtype)


def qkv_proj_pallas(x2d, w_qkv, b_qkv, gains, *, d_model, qk_norm, eps, k_tile=None):
    rows, d_in = x2d.shape
    d_out = w_qkv.shape[1]                       # 3 * d_model
    itemsize = x2d.dtype.itemsize
    tk = _pick_k_tile(d_in, k_tile)
    tm = _pick_row_tile(rows, tk, d_out, d_out, itemsize)
    grid = (pl.cdiv(rows, tm), pl.cdiv(d_in, tk))
    n_row_tiles = grid[0]

    cost = pl.CostEstimate(
        flops=int(2 * rows * d_in * d_out + (6 * rows * d_model if qk_norm else 0)),
        transcendentals=int(2 * rows if qk_norm else 0),
        bytes_accessed=int(itemsize * (rows * d_in
                                       + n_row_tiles * d_in * d_out
                                       + rows * d_out + d_out + 2 * d_model)),
    )
    kern = functools.partial(_qkv_kernel, d_model=d_model, qk_norm=qk_norm, eps=eps)
    out_shape = (jax.ShapeDtypeStruct((rows, d_model), x2d.dtype),
                 jax.ShapeDtypeStruct((rows, d_model), x2d.dtype),
                 jax.ShapeDtypeStruct((rows, d_model), x2d.dtype))
    return pl.pallas_call(
        kern,
        out_shape=out_shape,
        grid_spec=pltpu.PrefetchScalarGridSpec(
            num_scalar_prefetch=0,
            grid=grid,
            in_specs=[
                pl.BlockSpec((tm, tk), lambda i, kk: (i, kk)),
                pl.BlockSpec((tk, d_out), lambda i, kk: (kk, 0)),
                pl.BlockSpec((1, d_out), lambda i, kk: (0, 0)),
                pl.BlockSpec((2, d_model), lambda i, kk: (0, 0)),
            ],
            out_specs=[
                pl.BlockSpec((tm, d_model), lambda i, kk: (i, 0)),
                pl.BlockSpec((tm, d_model), lambda i, kk: (i, 0)),
                pl.BlockSpec((tm, d_model), lambda i, kk: (i, 0)),
            ],
            scratch_shapes=[pltpu.VMEM((tm, d_out), jnp.float32)],
        ),
        compiler_params=pltpu.CompilerParams(
            dimension_semantics=("parallel", "arbitrary"),
            vmem_limit_bytes=_VMEM_LIMIT),
        cost_estimate=cost,
    )(x2d, w_qkv, b_qkv.reshape(1, d_out), gains)


# ----------------------------------------------------------------------------
# Plain linear (output projection): y = x @ W + b, K-tiled with f32 accumulator
# ----------------------------------------------------------------------------
def _linear_kernel(x_ref, w_ref, b_ref, o_ref, acc_ref):
    k_step = pl.program_id(1)

    @pl.when(k_step == 0)
    def _():
        acc_ref[...] = jnp.zeros_like(acc_ref)

    acc_ref[...] += jnp.dot(x_ref[...], w_ref[...],
                            preferred_element_type=jnp.float32)

    @pl.when(k_step == pl.num_programs(1) - 1)
    def _():
        o_ref[...] = (acc_ref[...] + b_ref[...].astype(jnp.float32)).astype(o_ref.dtype)


def linear_pallas(x2d, w, b, *, k_tile=None):
    rows, d_in = x2d.shape
    d_out = w.shape[1]
    itemsize = x2d.dtype.itemsize
    tk = _pick_k_tile(d_in, k_tile)
    tm = _pick_row_tile(rows, tk, d_out, d_out, itemsize)
    grid = (pl.cdiv(rows, tm), pl.cdiv(d_in, tk))
    n_row_tiles = grid[0]
    cost = pl.CostEstimate(
        flops=int(2 * rows * d_in * d_out),
        transcendentals=0,
        bytes_accessed=int(itemsize * (rows * d_in + n_row_tiles * d_in * d_out
                                       + rows * d_out + d_out)),
    )
    return pl.pallas_call(
        _linear_kernel,
        out_shape=jax.ShapeDtypeStruct((rows, d_out), x2d.dtype),
        grid_spec=pltpu.PrefetchScalarGridSpec(
            num_scalar_prefetch=0,
            grid=grid,
            in_specs=[
                pl.BlockSpec((tm, tk), lambda i, kk: (i, kk)),
                pl.BlockSpec((tk, d_out), lambda i, kk: (kk, 0)),
                pl.BlockSpec((1, d_out), lambda i, kk: (0, 0)),
            ],
            out_specs=pl.BlockSpec((tm, d_out), lambda i, kk: (i, 0)),
            scratch_shapes=[pltpu.VMEM((tm, d_out), jnp.float32)],
        ),
        compiler_params=pltpu.CompilerParams(
            dimension_semantics=("parallel", "arbitrary"),
            vmem_limit_bytes=_VMEM_LIMIT),
        cost_estimate=cost,
    )(x2d, w, b.reshape(1, d_out))


# ----------------------------------------------------------------------------
# Attention: softmax(q k^T * scale) v, online softmax, all heads per grid step.
# q/k/v/o stay in (B*S, D) layout; heads are static in-register slices of D.
# ----------------------------------------------------------------------------
def _attention_kernel(q_ref, k_ref, v_ref, o_ref, m_sc, l_sc, acc_sc,
                      *, num_heads, head_dim, scale):
    kv = pl.program_id(2)

    @pl.when(kv == 0)
    def _():
        m_sc[...] = jnp.full(m_sc.shape, -jnp.inf, dtype=jnp.float32)
        l_sc[...] = jnp.zeros_like(l_sc)
        acc_sc[...] = jnp.zeros_like(acc_sc)

    # Fold the softmax scale into q once per step (tq*D multiplies, cheaper than
    # scaling every (tq, tk) score matrix); MXU operands stay in the wire dtype.
    q_all = q_ref[...] * scale          # (tq, D)
    k_all = k_ref[...]                  # (tk, D)
    v_all = v_ref[...]                  # (tk, D)

    for h in range(num_heads):          # static unroll over heads
        lo, hi = h * head_dim, (h + 1) * head_dim
        qh = q_all[:, lo:hi]
        kh = k_all[:, lo:hi]
        vh = v_all[:, lo:hi]
        # q @ k^T by contracting the head dim (no materialized transpose).
        s = jax.lax.dot_general(qh, kh, (((1,), (1,)), ((), ())),
                                preferred_element_type=jnp.float32)   # (tq, tk)
        m_prev = m_sc[h]                                              # (tq, 1)
        m_new = jnp.maximum(m_prev, s.max(axis=-1, keepdims=True))
        alpha = jnp.exp(m_prev - m_new)
        p = jnp.exp(s - m_new)
        l_sc[h] = alpha * l_sc[h] + p.sum(axis=-1, keepdims=True)
        acc_sc[h] = alpha * acc_sc[h] + jnp.dot(p.astype(vh.dtype), vh,
                                                preferred_element_type=jnp.float32)
        m_sc[h] = m_new

    @pl.when(kv == pl.num_programs(2) - 1)
    def _():
        outs = [acc_sc[h] * pl.reciprocal(l_sc[h], approx=True)
                for h in range(num_heads)]
        # Lane-dense (tq, D) store that feeds the output projection directly.
        o_ref[...] = jnp.concatenate(outs, axis=-1).astype(o_ref.dtype)


def attention_pallas(q2d, k2d, v2d, *, batch, seq, num_heads, scale,
                     tq_cap=None, tk_cap=None):
    rows, d_model = q2d.shape
    head_dim = d_model // num_heads
    itemsize = q2d.dtype.itemsize
    auto_tq, auto_tk = _attn_tiles(seq, d_model, num_heads, head_dim, itemsize)
    tq = _attn_seq_tile(seq, tq_cap) if tq_cap is not None else auto_tq
    tk = _attn_seq_tile(seq, tk_cap) if tk_cap is not None else auto_tk
    nq, nk = seq // tq, seq // tk
    grid = (batch, nq, nk)

    kern = functools.partial(_attention_kernel, num_heads=num_heads,
                             head_dim=head_dim, scale=scale)
    cost = pl.CostEstimate(
        flops=int(4 * batch * num_heads * seq * seq * head_dim),
        transcendentals=int(batch * num_heads * seq * seq),
        # q and o streamed once; k and v streamed once per q tile (x nq).
        bytes_accessed=int(itemsize * (2 * rows * d_model + 2 * rows * d_model * nq)),
    )
    return pl.pallas_call(
        kern,
        out_shape=jax.ShapeDtypeStruct((rows, d_model), q2d.dtype),
        grid_spec=pltpu.PrefetchScalarGridSpec(
            num_scalar_prefetch=0,
            grid=grid,
            in_specs=[
                pl.BlockSpec((tq, d_model), lambda b, i, j: (b * nq + i, 0)),
                pl.BlockSpec((tk, d_model), lambda b, i, j: (b * nk + j, 0)),
                pl.BlockSpec((tk, d_model), lambda b, i, j: (b * nk + j, 0)),
            ],
            out_specs=pl.BlockSpec((tq, d_model), lambda b, i, j: (b * nq + i, 0)),
            scratch_shapes=[
                pltpu.VMEM((num_heads, tq, 1), jnp.float32),          # running max
                pltpu.VMEM((num_heads, tq, 1), jnp.float32),          # running denom
                pltpu.VMEM((num_heads, tq, head_dim), jnp.float32),   # running numerator
            ],
        ),
        compiler_params=pltpu.CompilerParams(
            dimension_semantics=("parallel", "parallel", "arbitrary"),
            vmem_limit_bytes=_VMEM_LIMIT),
        cost_estimate=cost,
    )(q2d, k2d, v2d)


# ----------------------------------------------------------------------------
# Full SelfAttention forward
# ----------------------------------------------------------------------------
def self_attention(x, params, num_heads, *, qk_norm=False, eps=1e-6,
                   k_tile=None, attn_tq_cap=None, attn_tk_cap=None):
    """x: (B, S, D). Weights stored as (in, out) = PyTorch weight.T."""
    B, S, D = x.shape
    head_dim = D // num_heads
    scale = head_dim ** (-0.5)
    rows = B * S
    x2d = x.reshape(rows, D)

    # Packed QKV weight/bias (in a real model these would be stored pre-fused;
    # the concat here is weight-sized and outside the per-token hot path).
    w_qkv = jnp.concatenate([params["wq"], params["wk"], params["wv"]], axis=1)
    b_qkv = jnp.concatenate([params["bq"], params["bk"], params["bv"]], axis=0)
    if qk_norm:
        gains = jnp.stack([params["norm_q"], params["norm_k"]], axis=0).astype(x.dtype)
    else:
        gains = jnp.ones((2, D), dtype=x.dtype)

    q2d, k2d, v2d = qkv_proj_pallas(x2d, w_qkv, b_qkv, gains,
                                    d_model=D, qk_norm=qk_norm, eps=eps, k_tile=k_tile)
    o2d = attention_pallas(q2d, k2d, v2d, batch=B, seq=S, num_heads=num_heads,
                           scale=scale, tq_cap=attn_tq_cap, tk_cap=attn_tk_cap)
    y2d = linear_pallas(o2d, params["wo"], params["bo"], k_tile=k_tile)
    return y2d.reshape(B, S, D)


# ----------------------------------------------------------------------------
# Pure-JAX reference (mirrors the PyTorch forward, HIGHEST-precision matmuls)
# ----------------------------------------------------------------------------
def _ref_rmsnorm(t, w, eps):
    return t * jax.lax.rsqrt(jnp.mean(t * t, axis=-1, keepdims=True) + eps) * w


def _ref_self_attention(x, p, num_heads, qk_norm, eps):
    B, S, D = x.shape
    hd = D // num_heads
    hp = jax.lax.Precision.HIGHEST
    q = jnp.dot(x, p["wq"], precision=hp) + p["bq"]
    k = jnp.dot(x, p["wk"], precision=hp) + p["bk"]
    v = jnp.dot(x, p["wv"], precision=hp) + p["bv"]
    if qk_norm:
        q = _ref_rmsnorm(q, p["norm_q"], eps)
        k = _ref_rmsnorm(k, p["norm_k"], eps)
    q = q.reshape(B, S, num_heads, hd).transpose(0, 2, 1, 3)
    k = k.reshape(B, S, num_heads, hd).transpose(0, 2, 1, 3)
    v = v.reshape(B, S, num_heads, hd).transpose(0, 2, 1, 3)
    attn = jnp.einsum("bhqd,bhkd->bhqk", q, k, precision=hp) * (hd ** -0.5)
    attn = jax.nn.softmax(attn, axis=-1)
    o = jnp.einsum("bhqk,bhkd->bhqd", attn, v, precision=hp)
    o = o.transpose(0, 2, 1, 3).reshape(B, S, D)
    return jnp.dot(o, p["wo"], precision=hp) + p["bo"]


# ----------------------------------------------------------------------------
# Demo / correctness check
# ----------------------------------------------------------------------------
def _make_params(key, dim):
    keys = jax.random.split(key, 11)

    def w_init(k):
        return jax.random.normal(k, (dim, dim), jnp.float32) / jnp.sqrt(jnp.float32(dim))

    def b_init(k):
        return 0.1 * jax.random.normal(k, (dim,), jnp.float32)

    params = {
        "wq": w_init(keys[0]), "bq": b_init(keys[1]),
        "wk": w_init(keys[2]), "bk": b_init(keys[3]),
        "wv": w_init(keys[4]), "bv": b_init(keys[5]),
        "wo": w_init(keys[6]), "bo": b_init(keys[7]),
        # RMSNorm weights (PyTorch inits to ones; perturb to strengthen the check)
        "norm_q": 1.0 + 0.1 * jax.random.normal(keys[8], (dim,), jnp.float32),
        "norm_k": 1.0 + 0.1 * jax.random.normal(keys[9], (dim,), jnp.float32),
    }
    return params, keys[10]


def _run_case(name, key, *, batch, seq, dim, num_heads, qk_norm, tol,
              k_tile=None, attn_tq_cap=None, attn_tk_cap=None):
    params, xkey = _make_params(key, dim)
    x = jax.random.normal(xkey, (batch, seq, dim), jnp.float32)
    y = self_attention(x, params, num_heads, qk_norm=qk_norm, eps=1e-6,
                       k_tile=k_tile, attn_tq_cap=attn_tq_cap, attn_tk_cap=attn_tk_cap)
    y = jax.block_until_ready(y)
    y_ref = _ref_self_attention(x, params, num_heads, qk_norm, 1e-6)
    assert y.shape == y_ref.shape, f"{name}: shape mismatch vs reference"
    err = float(jnp.max(jnp.abs(y - y_ref)))
    assert jnp.allclose(y, y_ref, atol=tol, rtol=tol), \
        f"{name}: mismatch vs reference (max abs err {err:.3e})"


if __name__ == "__main__":
    k1, k2 = jax.random.split(jax.random.PRNGKey(0))

    # Small demo shapes (single tile everywhere).
    _run_case("small", k1, batch=2, seq=8, dim=32, num_heads=4, qk_norm=True, tol=1e-2)

    # Multi-tile exercise: 2 reduction steps in both projections and a 2x2 q/kv
    # tiling per batch in the attention (online softmax across kv steps).
    # Tolerance covers default-precision MXU matmuls vs the HIGHEST-precision
    # reference at 256-deep contractions; algorithmic errors would be O(1).
    _run_case("tiled", k2, batch=2, seq=256, dim=256, num_heads=4, qk_norm=True,
              tol=3e-2, k_tile=128, attn_tq_cap=128, attn_tk_cap=128)

    print("KERNEL_OK")
</pallas_src>

<mosaic_0001>
module attributes {stable_mosaic.version = 11 : i64} {
  func.func @_qkv_kernel(%arg0: i32, %arg1: i32, %arg2: memref<16x32xf32, #tpu.memory_space<vmem>>, %arg3: memref<32x96xf32, #tpu.memory_space<vmem>>, %arg4: memref<1x96xf32, #tpu.memory_space<vmem>>, %arg5: memref<2x32xf32, #tpu.memory_space<vmem>>, %arg6: memref<16x32xf32, #tpu.memory_space<vmem>>, %arg7: memref<16x32xf32, #tpu.memory_space<vmem>>, %arg8: memref<16x32xf32, #tpu.memory_space<vmem>>, %arg9: memref<16x96xf32, #tpu.memory_space<vmem>>) attributes {dimension_semantics = [#tpu.dimension_semantics<parallel>, #tpu.dimension_semantics<arbitrary>], iteration_bounds = array<i64: 1, 1>, scalar_prefetch = 0 : i64, scratch_operands = 1 : i64, tpu.core_type = #tpu.core_type<tc>, window_params = [{transform_indices = @transform_0, window_bounds = array<i64: 16, 32>}, {transform_indices = @transform_1, window_bounds = array<i64: 32, 96>}, {pipeline_mode = #tpu.pipeline_mode<synchronous>, transform_indices = @transform_2, window_bounds = array<i64: 1, 96>}, {pipeline_mode = #tpu.pipeline_mode<synchronous>, transform_indices = @transform_3, window_bounds = array<i64: 2, 32>}, {transform_indices = @transform_4, window_bounds = array<i64: 16, 32>}, {transform_indices = @transform_5, window_bounds = array<i64: 16, 32>}, {transform_indices = @transform_6, window_bounds = array<i64: 16, 32>}]} {
    %c0_i32 = arith.constant 0 : i32
    %0 = arith.cmpi eq, %arg1, %c0_i32 : i32
    %1 = arith.extui %0 : i1 to i32
    %c0_i32_0 = arith.constant 0 : i32
    %2 = arith.cmpi ne, %1, %c0_i32_0 : i32
    scf.if %2 {
      %cst_10 = arith.constant 0.000000e+00 : f32
      %12 = vector.broadcast %cst_10 : f32 to vector<16x96xf32>
      %c0_11 = arith.constant 0 : index
      %c0_12 = arith.constant 0 : index
      %13 = vector.load %arg9[%c0_11, %c0_12] : memref<16x96xf32, #tpu.memory_space<vmem>>, vector<16x96xf32>
      tpu.vector_store %arg9[%c0_11, %c0_12], %12 {strides = array<i32>} : memref<16x96xf32, #tpu.memory_space<vmem>>, vector<16x96xf32>,
    } else {
    }
    %c0 = arith.constant 0 : index
    %c0_1 = arith.constant 0 : index
    %3 = vector.load %arg9[%c0, %c0_1] : memref<16x96xf32, #tpu.memory_space<vmem>>, vector<16x96xf32>
    %c0_2 = arith.constant 0 : index
    %c0_3 = arith.constant 0 : index
    %4 = vector.load %arg2[%c0_2, %c0_3] : memref<16x32xf32, #tpu.memory_space<vmem>>, vector<16x32xf32>
    %c0_4 = arith.constant 0 : index
    %c0_5 = arith.constant 0 : index
    %5 = vector.load %arg3[%c0_4, %c0_5] : memref<32x96xf32, #tpu.memory_space<vmem>>, vector<32x96xf32>
    %cst = arith.constant dense<0.000000e+00> : vector<16x96xf32>
    %6 = tpu.matmul %4, %5, %cst {dimension_numbers = #tpu.dot_dimension_numbers<[1], [0], [0], [1], [0, 0, 1, 1], [], []>} : vector<16x32xf32>, vector<32x96xf32>, vector<16x96xf32> -> vector<16x96xf32>
    %7 = arith.addf %3, %6 : vector<16x96xf32>
    %c0_6 = arith.constant 0 : index
    %c0_7 = arith.constant 0 : index
    %8 = vector.load %arg9[%c0_6, %c0_7] : memref<16x96xf32, #tpu.memory_space<vmem>>, vector<16x96xf32>
    tpu.vector_store %arg9[%c0_6, %c0_7], %7 {strides = array<i32>} : memref<16x96xf32, #tpu.memory_space<vmem>>, vector<16x96xf32>,
    %c0_i32_8 = arith.constant 0 : i32
    %9 = arith.cmpi eq, %arg1, %c0_i32_8 : i32
    %10 = arith.extui %9 : i1 to i32
    %c0_i32_9 = arith.constant 0 : i32
    %11 = arith.cmpi ne, %10, %c0_i32_9 : i32
    scf.if %11 {
      %c0_10 = arith.constant 0 : index
      %c0_11 = arith.constant 0 : index
      %12 = vector.load %arg9[%c0_10, %c0_11] : memref<16x96xf32, #tpu.memory_space<vmem>>, vector<16x96xf32>
      %c0_12 = arith.constant 0 : index
      %c0_13 = arith.constant 0 : index
      %13 = vector.load %arg4[%c0_12, %c0_13] : memref<1x96xf32, #tpu.memory_space<vmem>>, vector<1x96xf32>
      %14 = vector.broadcast %13 : vector<1x96xf32> to vector<16x96xf32>
      %15 = arith.addf %12, %14 : vector<16x96xf32>
      %16 = vector.extract_strided_slice %15 {offsets = [0, 0], sizes = [16, 32], strides = [1, 1]} : vector<16x96xf32> to vector<16x32xf32>
      %17 = vector.extract_strided_slice %15 {offsets = [0, 32], sizes = [16, 32], strides = [1, 1]} : vector<16x96xf32> to vector<16x32xf32>
      %18 = vector.extract_strided_slice %15 {offsets = [0, 64], sizes = [16, 32], strides = [1, 1]} : vector<16x96xf32> to vector<16x32xf32>
      %c0_14 = arith.constant 0 : index
      %c0_15 = arith.constant 0 : index
      %19 = vector.load %arg5[%c0_14, %c0_15] : memref<2x32xf32, #tpu.memory_space<vmem>>, vector<2x32xf32>
      %20 = vector.extract_strided_slice %19 {offsets = [0, 0], sizes = [1, 32], strides = [1, 1]} : vector<2x32xf32> to vector<1x32xf32>
      %21 = vector.extract_strided_slice %19 {offsets = [1, 0], sizes = [1, 32], strides = [1, 1]} : vector<2x32xf32> to vector<1x32xf32>
      %22 = arith.mulf %16, %16 : vector<16x32xf32>
      %cst_16 = arith.constant dense<0.000000e+00> : vector<16xf32>
      %23 = vector.multi_reduction <add>, %22, %cst_16 [1] : vector<16x32xf32> to vector<16xf32>
      %24 = vector.shape_cast %23 : vector<16xf32> to vector<16x1xf32>
      %cst_17 = arith.constant 3.200000e+01 : f32
      %25 = vector.broadcast %cst_17 : f32 to vector<16x1xf32>
      %26 = arith.divf %24, %25 : vector<16x1xf32>
      %cst_18 = arith.constant 9.99999997E-7 : f32
      %27 = vector.broadcast %cst_18 : f32 to vector<16x1xf32>
      %28 = arith.addf %26, %27 : vector<16x1xf32>
      %29 = math.rsqrt %28 : vector<16x1xf32>
      %30 = vector.broadcast %29 : vector<16x1xf32> to vector<16x32xf32>
      %31 = arith.mulf %16, %30 : vector<16x32xf32>
      %32 = vector.broadcast %20 : vector<1x32xf32> to vector<16x32xf32>
      %33 = arith.mulf %31, %32 : vector<16x32xf32>
      %34 = arith.mulf %17, %17 : vector<16x32xf32>
      %cst_19 = arith.constant dense<0.000000e+00> : vector<16xf32>
      %35 = vector.multi_reduction <add>, %34, %cst_19 [1] : vector<16x32xf32> to vector<16xf32>
      %36 = vector.shape_cast %35 : vector<16xf32> to vector<16x1xf32>
      %cst_20 = arith.constant 3.200000e+01 : f32
      %37 = vector.broadcast %cst_20 : f32 to vector<16x1xf32>
      %38 = arith.divf %36, %37 : vector<16x1xf32>
      %cst_21 = arith.constant 9.99999997E-7 : f32
      %39 = vector.broadcast %cst_21 : f32 to vector<16x1xf32>
      %40 = arith.addf %38, %39 : vector<16x1xf32>
      %41 = math.rsqrt %40 : vector<16x1xf32>
      %42 = vector.broadcast %41 : vector<16x1xf32> to vector<16x32xf32>
      %43 = arith.mulf %17, %42 : vector<16x32xf32>
      %44 = vector.broadcast %21 : vector<1x32xf32> to vector<16x32xf32>
      %45 = arith.mulf %43, %44 : vector<16x32xf32>
      %c0_22 = arith.constant 0 : index
      %c0_23 = arith.constant 0 : index
      %46 = vector.load %arg6[%c0_22, %c0_23] : memref<16x32xf32, #tpu.memory_space<vmem>>, vector<16x32xf32>
      tpu.vector_store %arg6[%c0_22, %c0_23], %33 {strides = array<i32>} : memref<16x32xf32, #tpu.memory_space<vmem>>, vector<16x32xf32>,
      %c0_24 = arith.constant 0 : index
      %c0_25 = arith.constant 0 : index
      %47 = vector.load %arg7[%c0_24, %c0_25] : memref<16x32xf32, #tpu.memory_space<vmem>>, vector<16x32xf32>
      tpu.vector_store %arg7[%c0_24, %c0_25], %45 {strides = array<i32>} : memref<16x32xf32, #tpu.memory_space<vmem>>, vector<16x32xf32>,
      %c0_26 = arith.constant 0 : index
      %c0_27 = arith.constant 0 : index
      %48 = vector.load %arg8[%c0_26, %c0_27] : memref<16x32xf32, #tpu.memory_space<vmem>>, vector<16x32xf32>
      tpu.vector_store %arg8[%c0_26, %c0_27], %18 {strides = array<i32>} : memref<16x32xf32, #tpu.memory_space<vmem>>, vector<16x32xf32>,
    } else {
    }
    return
  }
  func.func @transform_0(%arg0: i32, %arg1: i32) -> (i32, i32) {
    %c0_i32 = arith.constant 0 : i32
    return %arg0, %arg1 : i32, i32
  }
  func.func @transform_1(%arg0: i32, %arg1: i32) -> (i32, i32) {
    %c0_i32 = arith.constant 0 : i32
    %c0_i32_0 = arith.constant 0 : i32
    return %arg1, %c0_i32 : i32, i32
  }
  func.func @transform_2(%arg0: i32, %arg1: i32) -> (i32, i32) {
    %c0_i32 = arith.constant 0 : i32
    %c0_i32_0 = arith.constant 0 : i32
    %c0_i32_1 = arith.constant 0 : i32
    return %c0_i32, %c0_i32_0 : i32, i32
  }
  func.func @transform_3(%arg0: i32, %arg1: i32) -> (i32, i32) {
    %c0_i32 = arith.constant 0 : i32
    %c0_i32_0 = arith.constant 0 : i32
    %c0_i32_1 = arith.constant 0 : i32
    return %c0_i32, %c0_i32_0 : i32, i32
  }
  func.func @transform_4(%arg0: i32, %arg1: i32) -> (i32, i32) {
    %c0_i32 = arith.constant 0 : i32
    %c0_i32_0 = arith.constant 0 : i32
    return %arg0, %c0_i32 : i32, i32
  }
  func.func @transform_5(%arg0: i32, %arg1: i32) -> (i32, i32) {
    %c0_i32 = arith.constant 0 : i32
    %c0_i32_0 = arith.constant 0 : i32
    return %arg0, %c0_i32 : i32, i32
  }
  func.func @transform_6(%arg0: i32, %arg1: i32) -> (i32, i32) {
    %c0_i32 = arith.constant 0 : i32
    %c0_i32_0 = arith.constant 0 : i32
    return %arg0, %c0_i32 : i32, i32
  }
}

</mosaic_0001>

<llo_original>
// kernel: tpu_custom_call.1
$region0: #{tpu_custom_call.1}
  #allocation0 [shape = 'u32[]', space=smem, size = 0x4, offset = 0x4, fixed_abs, tag = 'smem constant byte address 0x4 - core index']
  #allocation1 [shape = 'u32[144,128]{1,0:T(1,128)}', space=vmem, size = 0x12000, scoped, tag = 'internal scratch']
  #allocation2 [shape = 'f32[16,96]{1,0:T(8,128)}', space=vmem, size = 0x2000, scoped, tag = 'scratch operand']
  %s0 = inlined_call_operand.hbm [shape: f32[16,32], index: 0, kind: input, shape index: {}]
  %s1 = inlined_call_operand.hbm [shape: f32[32,96], index: 1, kind: input, shape index: {}]
  %s2 = inlined_call_operand.vmem [shape: f32[1,96], index: 2, kind: input, shape index: {}]
  %s3 = inlined_call_operand.vmem [shape: f32[2,32], index: 3, kind: input, shape index: {}]
  %s4 = inlined_call_operand.hbm [shape: f32[16,32], index: 4, kind: output, shape index: {0}]
  %s5 = inlined_call_operand.hbm [shape: f32[16,32], index: 5, kind: output, shape index: {1}]
  %s6 = inlined_call_operand.hbm [shape: f32[16,32], index: 6, kind: output, shape index: {2}]
  %7 = xla_tuple %s4, %s5, %s6
  %s8 = sld [smem:[#allocation0]]
  $region58: #{tpu_custom_call.1} parent=0
    _
  %s10 = ssub.s32 1, %s8
  %s11 = scalar_select 0, %s10, %s8
  $region1: #{tpu_custom_call.1} parent=0
    #allocation3 [shape = 'u8[8192]{0}', space=vmem, size = 0x2000, scoped, tag = 'input window, operand 0, single buffered']
    #allocation4 [shape = 's32[1]{0}', space=sflag, size = 0x4, scoped, tag = 'scoped memory for tpu_custom_call.1']
    #allocation5 [shape = 's32[1]{0}', space=sflag, size = 0x4, scoped, tag = 'scoped memory for tpu_custom_call.1']
    #allocation6 [shape = 'u8[16384]{0}', space=vmem, size = 0x4000, scoped, tag = 'input window, operand 1, single buffered']
    #allocation7 [shape = 's32[1]{0}', space=sflag, size = 0x4, scoped, tag = 'scoped memory for tpu_custom_call.1']
    #allocation8 [shape = 'u8[8192]{0}', space=vmem, size = 0x2000, scoped, tag = 'output window, operand 0, single buffered']
    #allocation9 [shape = 'u8[8192]{0}', space=vmem, size = 0x2000, scoped, tag = 'output window, operand 1, single buffered']
    #allocation10 [shape = 's32[1]{0}', space=sflag, size = 0x4, scoped, tag = 'scoped memory for tpu_custom_call.1']
    #allocation11 [shape = 'u8[8192]{0}', space=vmem, size = 0x2000, scoped, tag = 'output window, operand 2, single buffered']
    %12 = vsyncpa [#allocation4], 0
    %13 = vsyncpa [#allocation7], 0
    %14 = vsyncpa [#allocation5], 0
    %15 = vsyncpa [#allocation10], 0
    // Predicated region
    $region2: #{tpu_custom_call.1} parent=1 // pred_check
      _
    $region3: #{tpu_custom_call.1} parent=1 // pred_check_branch
      %17 = sbr.rel (0) target = $region5
    $region4: #{tpu_custom_call.1} parent=1 // pred_region
      %s19 = ssub.s32 256, 256
      %20 = vsyncadd [#allocation4], %s19
      %s21 = sshll.u32 [#allocation3], 4
      %s22 = int_to_ptr.vmem [resolvable:$true] %s21
      %27 = dma.hbm_to_vmem [thread:$0]  %s0, 256, %s22, [#allocation4], 128, 128, 8
    $region5: #{tpu_custom_call.1} parent=1 // pred_fallthru
      _
    // Predicated region
    $region6: #{tpu_custom_call.1} parent=1 // pred_check
      _
    $region7: #{tpu_custom_call.1} parent=1 // pred_check_branch
      %29 = sbr.rel (0) target = $region9
    $region8: #{tpu_custom_call.1} parent=1 // pred_region
      %s31 = ssub.s32 512, 512
      %32 = vsyncadd [#allocation7], %s31
      %s33 = sshll.u32 [#allocation6], 4
      %s34 = int_to_ptr.vmem [resolvable:$true] %s33
      %39 = dma.hbm_to_vmem [thread:$0]  %s1, 512, %s34, [#allocation7], 128, 128, 8
    $region9: #{tpu_custom_call.1} parent=1 // pred_fallthru
      _
    // Predicated region
    $region10: #{tpu_custom_call.1} parent=1 // pred_check
      _
    $region11: #{tpu_custom_call.1} parent=1 // pred_check_branch
      %41 = sbr.rel (0) target = $region13
    $region12: #{tpu_custom_call.1} parent=1 // pred_region
      _
    $region13: #{tpu_custom_call.1} parent=1 // pred_fallthru
      _
    // Predicated region
    $region14: #{tpu_custom_call.1} parent=1 // pred_check
      _
    $region15: #{tpu_custom_call.1} parent=1 // pred_check_branch
      %43 = sbr.rel (0) target = $region17
    $region16: #{tpu_custom_call.1} parent=1 // pred_region
      _
    $region17: #{tpu_custom_call.1} parent=1 // pred_fallthru
      _
    // Predicated region
    $region18: #{tpu_custom_call.1} parent=1 // pred_check
      _
    $region19: #{tpu_custom_call.1} parent=1 // pred_check_branch
      %45 = sbr.rel (0) target = $region21
    $region20: #{tpu_custom_call.1} parent=1 // pred_region
      %46 = dma.done [#allocation4], 256
    $region21: #{tpu_custom_call.1} parent=1 // pred_fallthru
      _
    // Predicated region
    $region22: #{tpu_custom_call.1} parent=1 // pred_check
      _
    $region23: #{tpu_custom_call.1} parent=1 // pred_check_branch
      %48 = sbr.rel (0) target = $region25
    $region24: #{tpu_custom_call.1} parent=1 // pred_region
      %49 = dma.done [#allocation7], 512
    $region25: #{tpu_custom_call.1} parent=1 // pred_fallthru
      _
    %p50 = scmp.eq.s32.totalorder 0, 0
    // Predicated region
    $region26: #{tpu_custom_call.1} parent=1 // pred_check
      %p51 = pneg %p50
    $region27: #{tpu_custom_call.1} parent=1 // pred_check_branch
      %53 = sbr.rel (%p51) target = $region29
    $region28: #{tpu_custom_call.1} parent=1 // pred_region
      %vm54 = vcmask 785408
      %55 = vst.msk [vmem:[#allocation2] sm:$0xff] %vm54, 0.0
      %56 = vst.msk [vmem:[#allocation2 + $0x8] sm:$0xff] %vm54, 0.0
    $region29: #{tpu_custom_call.1} parent=1 // pred_fallthru
      _
    %v57 = vld [vmem:[#allocation2] sm:$0xff]
    %v58 = vld [vmem:[#allocation2 + $0x8] sm:$0xff]
    %v59 = vld [vmem:[#allocation3] sm:$0xff]
    %v60 = vld [vmem:[#allocation3 + $0x8] sm:$0xff]
    %v61 = vld [vmem:[#allocation6] sm:$0xff]
    %v62 = vld [vmem:[#allocation6 + $0x8] sm:$0xff]
    %v63 = vld [vmem:[#allocation6 + $0x10] sm:$0xff]
    %v64 = vld [vmem:[#allocation6 + $0x18] sm:$0xff]
    %vm65 = vcmask 261120
    %v67 = vsel %vm65, %v59, 0
    %v70 = vsel %vm65, %v60, 0
    %72 = vmatprep.subr.mxu0 0.0
    %73 = vmatpush1.msra.mxu0 0.0
    %74 = vmatprep.subr.mxu0 0.0
    %75 = vmatpush1.msra.mxu0 0.0
    %76 = vmatprep.subr.mxu0 0.0
    %77 = vmatpush1.msra.mxu0 0.0
    %78 = vmatprep.subr.mxu0 0.0
    %79 = vmatpush1.msra.mxu0 0.0
    %80 = vmatprep.subr.mxu0 0.0
    %81 = vmatpush1.msra.mxu0 0.0
    %82 = vmatprep.subr.mxu0 0.0
    %83 = vmatpush1.msra.mxu0 0.0
    %84 = vmatprep.subr.mxu0 0.0
    %85 = vmatpush1.msra.mxu0 0.0
    %86 = vmatprep.subr.mxu0 0.0
    %87 = vmatpush1.msra.mxu0 0.0
    %88 = vmatprep.subr.mxu0 0.0
    %89 = vmatpush1.msra.mxu0 0.0
    %90 = vmatprep.subr.mxu0 0.0
    %91 = vmatpush1.msra.mxu0 0.0
    %92 = vmatprep.subr.mxu0 0.0
    %93 = vmatpush1.msra.mxu0 0.0
    %94 = vmatprep.subr.mxu0 0.0
    %95 = vmatpush1.msra.mxu0 0.0
    %96 = vmatprep.subr.mxu0 0.0
    %97 = vmatpush1.msra.mxu0 %v64
    %98 = vmatprep.subr.mxu0 0.0
    %99 = vmatpush1.msra.mxu0 %v63
    %100 = vmatprep.subr.mxu0 0.0
    %101 = vmatpush1.msra.mxu0 %v62
    %102 = vmatprep.subr.mxu0 0.0
    %103 = vmatpush1.msra.mxu0 %v61
    %104 = vmatprep.subr.mxu0 0.0
    %105 = vmatpush2.msra.mxu0 0.0
    %106 = vmatprep.subr.mxu0 0.0
    %107 = vmatpush2.msra.mxu0 0.0
    %108 = vmatprep.subr.mxu0 0.0
    %109 = vmatpush2.msra.mxu0 0.0
    %110 = vmatprep.subr.mxu0 0.0
    %111 = vmatpush2.msra.mxu0 0.0
    %112 = vmatprep.subr.mxu0 0.0
    %113 = vmatpush2.msra.mxu0 0.0
    %114 = vmatprep.subr.mxu0 0.0
    %115 = vmatpush2.msra.mxu0 0.0
    %116 = vmatprep.subr.mxu0 0.0
    %117 = vmatpush2.msra.mxu0 0.0
    %118 = vmatprep.subr.mxu0 0.0
    %119 = vmatpush2.msra.mxu0 0.0
    %120 = vmatprep.subr.mxu0 0.0
    %121 = vmatpush2.msra.mxu0 0.0
    %122 = vmatprep.subr.mxu0 0.0
    %123 = vmatpush2.msra.mxu0 0.0
    %124 = vmatprep.subr.mxu0 0.0
    %125 = vmatpush2.msra.mxu0 0.0
    %126 = vmatprep.subr.mxu0 0.0
    %127 = vmatpush2.msra.mxu0 0.0
    %128 = vmatprep.subr.mxu0 0.0
    %129 = vmatpush2.msra.mxu0 0.0
    %130 = vmatprep.subr.mxu0 0.0
    %131 = vmatpush2.msra.mxu0 0.0
    %132 = vmatprep.subr.mxu0 0.0
    %133 = vmatpush2.msra.mxu0 0.0
    %134 = vmatprep.subr.mxu0 0.0
    %135 = vmatpush2.msra.mxu0 0.0
    %136 = vmatprep.mubr.f32.mxu0 0.0
    %137 = vmatmul.mubr.f32.gmra.mxu0 %v67
    %v138 = vpop.f32.mrf.mxu0
    %v139 = vadd.f32 0.0, %v138
    %v140 = vpop.f32.mrf.mxu0
    %141 = vmatprep.mubr.f32.mxu0 0.0
    %142 = vmatmul.mubr.f32.gmra.mxu0 %v70
    %v143 = vpop.f32.mrf.mxu0
    %v144 = vadd.f32 0.0, %v143
    %v145 = vpop.f32.mrf.mxu0
    %146 = vdwg.mxu0
    %v147 = vadd.f32 %v57, %v139
    %v148 = vadd.f32 %v58, %v144
    %vm149 = vcmask 785408
    %150 = vst.msk [vmem:[#allocation2] sm:$0xff] %vm149, %v147
    %151 = vst.msk [vmem:[#allocation2 + $0x8] sm:$0xff] %vm149, %v148
    // Predicated region
    $region30: #{tpu_custom_call.1} parent=1 // pred_check
      %p152 = pneg %p50
    $region31: #{tpu_custom_call.1} parent=1 // pred_check_branch
      %154 = sbr.rel (%p152) target = $region33
    $region32: #{tpu_custom_call.1} parent=1 // pred_region
      %v155 = vld [vmem:[#allocation2] sm:$0xff]
      %v156 = vld [vmem:[#allocation2 + $0x8] sm:$0xff]
      %v157 = vld [vmem:[%s2] sm:$0x1]
      %v159 = vlaneseq
      %v160 = vshrl.u32 %v159, 7
      %v161 = vsub.s32 0, %v160
      %v162 = vrot.slane %v157, %v161
      %v164 = vadd.f32 %v155, %v162
      %v165 = vadd.f32 %v156, %v162
      %v166 = vld [vmem:[%s3] sm:$0x3]
      %v167 = vmul.f32 %v164, %v164
      %v168 = vmul.f32 %v165, %v165
      %v169 = vsel %vm65, %v167, 0.0
      %170 = vadd.xlane.f32.xlu0 %v169
      %v171 = vpop.xlane.xlu0 %170
      %v172 = vsel %vm65, %v168, 0.0
      %173 = vadd.xlane.f32.xlu0 %v172
      %v174 = vpop.xlane.xlu0 %173
      %v175 = vrcp.pop 32.0
      %v176 = vmul.f32 %v171, %v175
      %v177 = vmul.f32 %v174, %v175
      %v178 = vadd.f32 %v176, 1e-06
      %v179 = vadd.f32 %v177, 1e-06
      %v180 = vrsqrt.pop %v178
      %v181 = vrsqrt.pop %v179
      %v182 = vmul.f32 %v164, %v180
      %v183 = vmul.f32 %v165, %v181
      %v184 = vlaneseq
      %v185 = vshrl.u32 %v184, 7
      %v186 = vsub.s32 0, %v185
      %v187 = vrot.slane %v166, %v186
      %v188 = vmul.f32 %v182, %v187
      %v189 = vmul.f32 %v183, %v187
      %192 = vrot.lane.b32.xlu0 %v167, 96
      %v193 = vpop.permute.xlu0 %192
      %194 = vrot.lane.b32.xlu0 %v168, 96
      %v195 = vpop.permute.xlu0 %194
      %v198 = vsel %vm65, %v193, 0.0
      %199 = vadd.xlane.f32.xlu0 %v198
      %v200 = vpop.xlane.xlu0 %199
      %v201 = vsel %vm65, %v195, 0.0
      %202 = vadd.xlane.f32.xlu0 %v201
      %v203 = vpop.xlane.xlu0 %202
      %v204 = vmul.f32 %v200, %v175
      %v205 = vmul.f32 %v203, %v175
      %v206 = vadd.f32 %v204, 1e-06
      %v207 = vadd.f32 %v205, 1e-06
      %v208 = vrsqrt.pop %v206
      %v209 = vrsqrt.pop %v207
      %v210 = vmul.f32 %v164, %v208
      %v211 = vmul.f32 %v165, %v209
      %v212 = vlaneseq
      %v213 = vshrl.u32 %v212, 7
      %v214 = vsub.s32 1, %v213
      %v215 = vrot.slane %v166, %v214
      %217 = vrot.lane.b32.xlu0 %v215, 32
      %v218 = vpop.permute.xlu0 %217
      %v220 = vmul.f32 %v210, %v218
      %v221 = vmul.f32 %v211, %v218
      %222 = vst.msk [vmem:[#allocation8] sm:$0xff] %vm65, %v188
      %223 = vst.msk [vmem:[#allocation8 + $0x8] sm:$0xff] %vm65, %v189
      %226 = vrot.lane.b32.xlu0 %v220, 96
      %v227 = vpop.permute.xlu0 %226
      %228 = vrot.lane.b32.xlu0 %v221, 96
      %v229 = vpop.permute.xlu0 %228
      %232 = vst.msk [vmem:[#allocation9] sm:$0xff] %vm65, %v227
      %233 = vst.msk [vmem:[#allocation9 + $0x8] sm:$0xff] %vm65, %v229
      %236 = vrot.lane.b32.xlu0 %v164, 64
      %v237 = vpop.permute.xlu0 %236
      %238 = vrot.lane.b32.xlu0 %v165, 64
      %v239 = vpop.permute.xlu0 %238
      %242 = vst.msk [vmem:[#allocation11] sm:$0xff] %vm65, %v237
      %243 = vst.msk [vmem:[#allocation11 + $0x8] sm:$0xff] %vm65, %v239
    $region33: #{tpu_custom_call.1} parent=1 // pred_fallthru
      _
    // Predicated region
    $region34: #{tpu_custom_call.1} parent=1 // pred_check
      _
    $region35: #{tpu_custom_call.1} parent=1 // pred_check_branch
      %245 = sbr.rel (0) target = $region37
    $region36: #{tpu_custom_call.1} parent=1 // pred_region
      %s247 = ssub.s32 256, 256
      %248 = vsyncadd [#allocation5], %s247
      %s249 = sshll.u32 [#allocation8], 4
      %s250 = int_to_ptr.vmem [resolvable:$true] %s249
      %255 = dma.vmem_to_hbm [thread:$0]  %s250, 256, %s4, [#allocation5], 128, 128, 8
    $region37: #{tpu_custom_call.1} parent=1 // pred_fallthru
      _
    // Predicated region
    $region38: #{tpu_custom_call.1} parent=1 // pred_check
      _
    $region39: #{tpu_custom_call.1} parent=1 // pred_check_branch
      %257 = sbr.rel (0) target = $region41
    $region40: #{tpu_custom_call.1} parent=1 // pred_region
      %s259 = ssub.s32 256, 256
      %260 = vsyncadd [#allocation10], %s259
      %s261 = sshll.u32 [#allocation9], 4
      %s262 = int_to_ptr.vmem [resolvable:$true] %s261
      %267 = dma.vmem_to_hbm [thread:$0]  %s262, 256, %s5, [#allocation10], 128, 128, 8
    $region41: #{tpu_custom_call.1} parent=1 // pred_fallthru
      _
    // Predicated region
    $region42: #{tpu_custom_call.1} parent=1 // pred_check
      _
    $region43: #{tpu_custom_call.1} parent=1 // pred_check_branch
      %269 = sbr.rel (0) target = $region45
    $region44: #{tpu_custom_call.1} parent=1 // pred_region
      %s271 = ssub.s32 256, 256
      %272 = vsyncadd [#allocation10], %s271
      %s273 = sshll.u32 [#allocation11], 4
      %s274 = int_to_ptr.vmem [resolvable:$true] %s273
      %279 = dma.vmem_to_hbm [thread:$0]  %s274, 256, %s6, [#allocation10], 128, 128, 8
    $region45: #{tpu_custom_call.1} parent=1 // pred_fallthru
      _
    // Predicated region
    $region46: #{tpu_custom_call.1} parent=1 // pred_check
      _
    $region47: #{tpu_custom_call.1} parent=1 // pred_check_branch
      %281 = sbr.rel (0) target = $region49
    $region48: #{tpu_custom_call.1} parent=1 // pred_region
      %282 = dma.done [#allocation5], 256
    $region49: #{tpu_custom_call.1} parent=1 // pred_fallthru
      _
    // Predicated region
    $region50: #{tpu_custom_call.1} parent=1 // pred_check
      _
    $region51: #{tpu_custom_call.1} parent=1 // pred_check_branch
      %284 = sbr.rel (0) target = $region53
    $region52: #{tpu_custom_call.1} parent=1 // pred_region
      %285 = dma.done [#allocation10], 256
    $region53: #{tpu_custom_call.1} parent=1 // pred_fallthru
      _
    // Predicated region
    $region54: #{tpu_custom_call.1} parent=1 // pred_check
      _
    $region55: #{tpu_custom_call.1} parent=1 // pred_check_branch
      %287 = sbr.rel (0) target = $region57
    $region56: #{tpu_custom_call.1} parent=1 // pred_region
      %288 = dma.done [#allocation10], 256
    $region57: #{tpu_custom_call.1} parent=1 // pred_fallthru
      _
    %289 = vsyncpa [#allocation4], 1
    %290 = vsyncpa [#allocation7], 1
    %291 = vsyncpa [#allocation5], 1
    %292 = vsyncpa [#allocation10], 1

</llo_original>
